<compile_context>
chip_gen: v7x
topology: tpu7x:2x2x1
jax: 0.10.0
libtpu: 0.0.40
codegen_flags: <defaults>
</compile_context>

<pallas_src>
import jax
import jax.numpy as jnp
from jax import lax
from jax.experimental import pallas as pl
from jax.experimental.pallas import tpu as pltpu


# ---------------- small config consistent with the PyTorch module ----------------
class Config:
    vocab_size = 100
    dim = 32                 # embedding dim; Dynamic_embeddings sets max_len = dim
    hidden_size = 32         # conv kernel width; must equal dim so squeeze(3) works
    max_kernel_size = 4      # -> conv kernel heights 2, 3
    n_channel_per_window = 4
    label_size = 3
    dropout = 0.1            # inference: dropout is identity


# -------------------------------- Pallas kernel -----------------------------------
def make_wordcnn_kernel(kernel_sizes, B, S, D, C, L, eps=1e-12):
    n_total = len(kernel_sizes) * C

    def kernel(e_ref, w_ref, p_ref, out_ref):
        x = e_ref[...]                                   # (B*3*S, D)
        gamma = p_ref[0:1, :]                            # (1, D)
        beta = p_ref[1:2, :]                             # (1, D)

        # TF-style LayerNorm over last dim, all B*3*S rows in one pass.
        u = jnp.mean(x, axis=-1, keepdims=True)
        s = jnp.mean((x - u) ** 2, axis=-1, keepdims=True)
        xln = (x - u) * lax.rsqrt(s + eps)
        xln = xln * gamma + beta                         # (B*3*S, D)

        pooled_cols = []
        w_off = 0
        for i, k in enumerate(kernel_sizes):
            T = S - k + 1
            Kdim = 3 * k * D
            # im2col: batch stacked on sublanes; column order (ic, dk, d)
            # matches the (3, k, D, C) -> (3*k*D, C) weight reshape.
            xk = jnp.concatenate(
                [jnp.concatenate(
                    [xln[(b * 3 + ic) * S + dk:(b * 3 + ic) * S + dk + T, :]
                     for ic in range(3) for dk in range(k)],
                    axis=-1)
                 for b in range(B)],
                axis=0)                                  # (B*T, 3*k*D)
            wk = w_ref[w_off:w_off + Kdim, :]            # (3*k*D, C)
            bk = p_ref[2:3, i * C:(i + 1) * C]           # (1, C)
            conv = jnp.dot(xk, wk, preferred_element_type=jnp.float32)  # (B*T, C)
            conv = jnp.maximum(conv + bk, 0.0)           # conv bias + ReLU
            pooled_cols.append(jnp.concatenate(
                [jnp.max(conv[b * T:(b + 1) * T, :], axis=0, keepdims=True)
                 for b in range(B)],
                axis=0))                                 # (B, C)  max-pool over time
            w_off += Kdim

        pooled = jnp.concatenate(pooled_cols, axis=-1)   # (B, n_total)
        fcw = p_ref[4:4 + n_total, 0:L]                  # (n_total, L)
        fcb = p_ref[3:4, 0:L]                            # (1, L)
        out_ref[...] = (jnp.dot(pooled, fcw, preferred_element_type=jnp.float32)
                        + fcb)                           # (B, L)

    return kernel


# ------------------------------- wrapper (glue) ------------------------------------
def wordcnn_forward(params, token_ids, cfg):
    B, S = token_ids.shape
    D, C, L = cfg.dim, cfg.n_channel_per_window, cfg.label_size
    kernel_sizes = list(range(2, int(cfg.max_kernel_size)))
    n_total = len(kernel_sizes) * C

    assert cfg.hidden_size == cfg.dim, "conv kernel width must equal dim"
    assert S <= D, "pos_embed has max_len == dim; seq_len must be <= dim"
    # mask_embedding == tok_embed only holds while int(B*0.15) == 0 rows get masked.
    assert int(B * 0.15) == 0, "Dynamic_embeddings row-masking not modeled for B >= 7"

    # --- Dynamic_embeddings (gathers are glue; LayerNorm runs in the kernel) ---
    tok = jnp.take(params["tok_embed"], token_ids, axis=0)            # (B, S, D)
    pos_f = params["pos_embed"][:S]                                    # (S, D)
    pos_b = pos_f[::-1]
    fwd = tok + pos_f[None]
    bwd = tok + pos_b[None]
    # TODO(synk): stochastic row-masking and dropout are training-time randomness;
    # identity here (and int(B*0.15)==0 rows are masked anyway for this B).
    msk = tok
    e = jnp.stack([fwd, msk, bwd], axis=1).astype(jnp.float32)         # (B, 3, S, D)
    e2 = e.reshape(B * 3 * S, D)                                       # (B*3*S, D)

    # --- packed conv weights: one (sum_k 3*k*D, C) matrix ---
    w_blocks = []
    for k in kernel_sizes:
        w = params[f"conv{k}_w"]                                       # (C, 3, k, D) torch layout
        w_blocks.append(jnp.transpose(w, (1, 2, 3, 0)).reshape(3 * k * D, C))
    w_all = jnp.concatenate(w_blocks, axis=0).astype(jnp.float32)      # (W_rows, C)
    W_rows = w_all.shape[0]

    # --- packed small params: (4 + n_total, D) ---
    conv_b = jnp.concatenate([params[f"conv{k}_b"].reshape(-1) for k in kernel_sizes])
    p_rows = [
        params["gamma"].reshape(1, D),
        params["beta"].reshape(1, D),
        jnp.pad(conv_b, (0, D - conv_b.shape[0])).reshape(1, D),
        jnp.pad(params["fc_b"].reshape(-1), (0, D - L)).reshape(1, D),
        jnp.pad(params["fc_w"].T, ((0, 0), (0, D - L))),               # (n_total, D)
    ]
    p_small = jnp.concatenate(p_rows, axis=0).astype(jnp.float32)      # (4 + n_total, D)
    P_rows = p_small.shape[0]

    kernel = make_wordcnn_kernel(kernel_sizes, B, S, D, C, L)

    out = pl.pallas_call(
        kernel,
        out_shape=jax.ShapeDtypeStruct((B, L), jnp.float32),
        grid=(1,),
        in_specs=[
            pl.BlockSpec((B * 3 * S, D), lambda i: (0, 0)),
            pl.BlockSpec((W_rows, C), lambda i: (0, 0)),
            pl.BlockSpec((P_rows, D), lambda i: (0, 0)),
        ],
        out_specs=pl.BlockSpec((B, L), lambda i: (0, 0)),
        compiler_params=pltpu.CompilerParams(dimension_semantics=("arbitrary",)),
    )(e2, w_all, p_small)
    return out


# ------------------------ pure-JAX reference for validation ------------------------
def reference_forward(params, token_ids, cfg, eps=1e-12):
    B, S = token_ids.shape
    D, C, L = cfg.dim, cfg.n_channel_per_window, cfg.label_size
    kernel_sizes = list(range(2, int(cfg.max_kernel_size)))

    tok = jnp.take(params["tok_embed"], token_ids, axis=0)
    pos_f = params["pos_embed"][jnp.arange(S)]
    pos_b = params["pos_embed"][jnp.arange(S)[::-1]]
    e = jnp.stack([tok + pos_f[None], tok, tok + pos_b[None]], axis=1)   # (B, 3, S, D)
    u = e.mean(-1, keepdims=True)
    s = ((e - u) ** 2).mean(-1, keepdims=True)
    e = params["gamma"].reshape(D) * ((e - u) / jnp.sqrt(s + eps)) + params["beta"].reshape(D)

    feats = []
    for k in kernel_sizes:
        w = params[f"conv{k}_w"]                                          # (C, 3, k, D)
        b = params[f"conv{k}_b"]
        T = S - k + 1
        windows = jnp.stack([e[:, :, t:t + k, :] for t in range(T)], axis=2)  # (B,3,T,k,D)
        conv = jnp.einsum("bitkd,cikd->bct", windows, w,
                          precision=jax.lax.Precision.HIGHEST) + b[None, :, None]
        feats.append(jnp.max(jax.nn.relu(conv), axis=2))                  # (B, C)
    feat = jnp.concatenate(feats, axis=1)
    return jnp.dot(feat, params["fc_w"].T,
                   precision=jax.lax.Precision.HIGHEST) + params["fc_b"]


# ----------------------------- deterministic params --------------------------------
def init_params(cfg, key):
    D, V, C, L = cfg.dim, cfg.vocab_size, cfg.n_channel_per_window, cfg.label_size
    kernel_sizes = list(range(2, int(cfg.max_kernel_size)))
    n_total = len(kernel_sizes) * C
    keys = jax.random.split(key, 4 + 2 * len(kernel_sizes))
    params = {
        "tok_embed": jax.random.normal(keys[0], (V, D), jnp.float32),
        "pos_embed": jax.random.normal(keys[1], (D, D), jnp.float32),   # max_len = dim
        "gamma": jnp.ones((1, D), jnp.float32),
        "beta": jnp.zeros((1, D), jnp.float32),
    }
    for i, k in enumerate(kernel_sizes):
        bound = 1.0 / (3 * k * D) ** 0.5
        params[f"conv{k}_w"] = jax.random.uniform(
            keys[2 + 2 * i], (C, 3, k, D), jnp.float32, -bound, bound)
        params[f"conv{k}_b"] = jax.random.uniform(
            keys[3 + 2 * i], (C,), jnp.float32, -bound, bound)
    bound = 1.0 / n_total ** 0.5
    params["fc_w"] = jax.random.uniform(keys[-2], (L, n_total), jnp.float32, -bound, bound)
    params["fc_b"] = jax.random.uniform(keys[-1], (L,), jnp.float32, -bound, bound)
    return params


if __name__ == "__main__":
    cfg = Config()
    B, S = 2, 8
    key = jax.random.PRNGKey(0)
    pkey, xkey = jax.random.split(key)
    params = init_params(cfg, pkey)
    token_ids = jax.random.randint(xkey, (B, S), 0, cfg.vocab_size, dtype=jnp.int32)

    logits = wordcnn_forward(params, token_ids, cfg)
    jax.block_until_ready(logits)

    ref = reference_forward(params, token_ids, cfg)
    assert logits.shape == (B, cfg.label_size)
    assert jnp.allclose(logits, ref, rtol=1e-3, atol=1e-3), (logits, ref)

    print("KERNEL_OK")
</pallas_src>

<mosaic_0001>
module attributes {stable_mosaic.version = 11 : i64} {
  func.func @kernel(%arg0: i32, %arg1: memref<48x32xf32, #tpu.memory_space<vmem>>, %arg2: memref<480x4xf32, #tpu.memory_space<vmem>>, %arg3: memref<12x32xf32, #tpu.memory_space<vmem>>, %arg4: memref<2x3xf32, #tpu.memory_space<vmem>>) attributes {dimension_semantics = [#tpu.dimension_semantics<arbitrary>], iteration_bounds = array<i64: 1>, scalar_prefetch = 0 : i64, scratch_operands = 0 : i64, tpu.core_type = #tpu.core_type<tc>, window_params = [{pipeline_mode = #tpu.pipeline_mode<synchronous>, transform_indices = @transform_0, window_bounds = array<i64: 48, 32>}, {pipeline_mode = #tpu.pipeline_mode<synchronous>, transform_indices = @transform_1, window_bounds = array<i64: 480, 4>}, {pipeline_mode = #tpu.pipeline_mode<synchronous>, transform_indices = @transform_2, window_bounds = array<i64: 12, 32>}, {pipeline_mode = #tpu.pipeline_mode<synchronous>, transform_indices = @transform_3, window_bounds = array<i64: 2, 3>}]} {
    %c0 = arith.constant 0 : index
    %c0_0 = arith.constant 0 : index
    %0 = vector.load %arg1[%c0, %c0_0] : memref<48x32xf32, #tpu.memory_space<vmem>>, vector<48x32xf32>
    %c0_1 = arith.constant 0 : index
    %c0_2 = arith.constant 0 : index
    %1 = vector.load %arg3[%c0_1, %c0_2] : memref<12x32xf32, #tpu.memory_space<vmem>>, vector<1x32xf32>
    %c1 = arith.constant 1 : index
    %c0_3 = arith.constant 0 : index
    %2 = vector.load %arg3[%c1, %c0_3] : memref<12x32xf32, #tpu.memory_space<vmem>>, vector<1x32xf32>
    %cst = arith.constant dense<0.000000e+00> : vector<48xf32>
    %3 = vector.multi_reduction <add>, %0, %cst [1] : vector<48x32xf32> to vector<48xf32>
    %4 = vector.shape_cast %3 : vector<48xf32> to vector<48x1xf32>
    %cst_4 = arith.constant 3.200000e+01 : f32
    %5 = vector.broadcast %cst_4 : f32 to vector<48x1xf32>
    %6 = arith.divf %4, %5 : vector<48x1xf32>
    %7 = vector.broadcast %6 : vector<48x1xf32> to vector<48x32xf32>
    %8 = arith.subf %0, %7 : vector<48x32xf32>
    %9 = arith.mulf %8, %8 : vector<48x32xf32>
    %cst_5 = arith.constant dense<0.000000e+00> : vector<48xf32>
    %10 = vector.multi_reduction <add>, %9, %cst_5 [1] : vector<48x32xf32> to vector<48xf32>
    %11 = vector.shape_cast %10 : vector<48xf32> to vector<48x1xf32>
    %cst_6 = arith.constant 3.200000e+01 : f32
    %12 = vector.broadcast %cst_6 : f32 to vector<48x1xf32>
    %13 = arith.divf %11, %12 : vector<48x1xf32>
    %14 = vector.broadcast %6 : vector<48x1xf32> to vector<48x32xf32>
    %15 = arith.subf %0, %14 : vector<48x32xf32>
    %cst_7 = arith.constant 9.99999996E-13 : f32
    %16 = vector.broadcast %cst_7 : f32 to vector<48x1xf32>
    %17 = arith.addf %13, %16 : vector<48x1xf32>
    %18 = math.rsqrt %17 : vector<48x1xf32>
    %19 = vector.broadcast %18 : vector<48x1xf32> to vector<48x32xf32>
    %20 = arith.mulf %15, %19 : vector<48x32xf32>
    %21 = vector.broadcast %1 : vector<1x32xf32> to vector<48x32xf32>
    %22 = arith.mulf %20, %21 : vector<48x32xf32>
    %23 = vector.broadcast %2 : vector<1x32xf32> to vector<48x32xf32>
    %24 = arith.addf %22, %23 : vector<48x32xf32>
    %25 = vector.extract_strided_slice %24 {offsets = [0, 0], sizes = [7, 32], strides = [1, 1]} : vector<48x32xf32> to vector<7x32xf32>
    %26 = vector.extract_strided_slice %24 {offsets = [1, 0], sizes = [7, 32], strides = [1, 1]} : vector<48x32xf32> to vector<7x32xf32>
    %27 = vector.extract_strided_slice %24 {offsets = [8, 0], sizes = [7, 32], strides = [1, 1]} : vector<48x32xf32> to vector<7x32xf32>
    %28 = vector.extract_strided_slice %24 {offsets = [9, 0], sizes = [7, 32], strides = [1, 1]} : vector<48x32xf32> to vector<7x32xf32>
    %29 = vector.extract_strided_slice %24 {offsets = [16, 0], sizes = [7, 32], strides = [1, 1]} : vector<48x32xf32> to vector<7x32xf32>
    %30 = vector.extract_strided_slice %24 {offsets = [17, 0], sizes = [7, 32], strides = [1, 1]} : vector<48x32xf32> to vector<7x32xf32>
    %31 = tpu.concatenate %25, %26, %27, %28, %29, %30 in 1 : vector<7x32xf32>, vector<7x32xf32>, vector<7x32xf32>, vector<7x32xf32>, vector<7x32xf32>, vector<7x32xf32> -> vector<7x192xf32>
    %32 = vector.extract_strided_slice %24 {offsets = [24, 0], sizes = [7, 32], strides = [1, 1]} : vector<48x32xf32> to vector<7x32xf32>
    %33 = vector.extract_strided_slice %24 {offsets = [25, 0], sizes = [7, 32], strides = [1, 1]} : vector<48x32xf32> to vector<7x32xf32>
    %34 = vector.extract_strided_slice %24 {offsets = [32, 0], sizes = [7, 32], strides = [1, 1]} : vector<48x32xf32> to vector<7x32xf32>
    %35 = vector.extract_strided_slice %24 {offsets = [33, 0], sizes = [7, 32], strides = [1, 1]} : vector<48x32xf32> to vector<7x32xf32>
    %36 = vector.extract_strided_slice %24 {offsets = [40, 0], sizes = [7, 32], strides = [1, 1]} : vector<48x32xf32> to vector<7x32xf32>
    %37 = vector.extract_strided_slice %24 {offsets = [41, 0], sizes = [7, 32], strides = [1, 1]} : vector<48x32xf32> to vector<7x32xf32>
    %38 = tpu.concatenate %32, %33, %34, %35, %36, %37 in 1 : vector<7x32xf32>, vector<7x32xf32>, vector<7x32xf32>, vector<7x32xf32>, vector<7x32xf32>, vector<7x32xf32> -> vector<7x192xf32>
    %39 = tpu.concatenate %31, %38 in 0 : vector<7x192xf32>, vector<7x192xf32> -> vector<14x192xf32>
    %c0_8 = arith.constant 0 : index
    %c0_9 = arith.constant 0 : index
    %40 = vector.load %arg2[%c0_8, %c0_9] : memref<480x4xf32, #tpu.memory_space<vmem>>, vector<192x4xf32>
    %c2 = arith.constant 2 : index
    %c0_10 = arith.constant 0 : index
    %41 = vector.load %arg3[%c2, %c0_10] : memref<12x32xf32, #tpu.memory_space<vmem>>, vector<1x4xf32>
    %cst_11 = arith.constant dense<0.000000e+00> : vector<14x4xf32>
    %42 = tpu.matmul %39, %40, %cst_11 {dimension_numbers = #tpu.dot_dimension_numbers<[1], [0], [0], [1], [0, 0, 1, 1], [], []>} : vector<14x192xf32>, vector<192x4xf32>, vector<14x4xf32> -> vector<14x4xf32>
    %43 = vector.broadcast %41 : vector<1x4xf32> to vector<14x4xf32>
    %44 = arith.addf %42, %43 : vector<14x4xf32>
    %cst_12 = arith.constant 0.000000e+00 : f32
    %45 = vector.broadcast %cst_12 : f32 to vector<14x4xf32>
    %46 = arith.maximumf %44, %45 : vector<14x4xf32>
    %47 = vector.extract_strided_slice %46 {offsets = [0, 0], sizes = [7, 4], strides = [1, 1]} : vector<14x4xf32> to vector<7x4xf32>
    %cst_13 = arith.constant dense<0xFF800000> : vector<4xf32>
    %48 = vector.multi_reduction <maximumf>, %47, %cst_13 [0] : vector<7x4xf32> to vector<4xf32>
    %49 = vector.shape_cast %48 : vector<4xf32> to vector<1x4xf32>
    %50 = vector.extract_strided_slice %46 {offsets = [7, 0], sizes = [7, 4], strides = [1, 1]} : vector<14x4xf32> to vector<7x4xf32>
    %cst_14 = arith.constant dense<0xFF800000> : vector<4xf32>
    %51 = vector.multi_reduction <maximumf>, %50, %cst_14 [0] : vector<7x4xf32> to vector<4xf32>
    %52 = vector.shape_cast %51 : vector<4xf32> to vector<1x4xf32>
    %53 = tpu.concatenate %49, %52 in 0 : vector<1x4xf32>, vector<1x4xf32> -> vector<2x4xf32>
    %54 = vector.extract_strided_slice %24 {offsets = [0, 0], sizes = [6, 32], strides = [1, 1]} : vector<48x32xf32> to vector<6x32xf32>
    %55 = vector.extract_strided_slice %24 {offsets = [1, 0], sizes = [6, 32], strides = [1, 1]} : vector<48x32xf32> to vector<6x32xf32>
    %56 = vector.extract_strided_slice %24 {offsets = [2, 0], sizes = [6, 32], strides = [1, 1]} : vector<48x32xf32> to vector<6x32xf32>
    %57 = vector.extract_strided_slice %24 {offsets = [8, 0], sizes = [6, 32], strides = [1, 1]} : vector<48x32xf32> to vector<6x32xf32>
    %58 = vector.extract_strided_slice %24 {offsets = [9, 0], sizes = [6, 32], strides = [1, 1]} : vector<48x32xf32> to vector<6x32xf32>
    %59 = vector.extract_strided_slice %24 {offsets = [10, 0], sizes = [6, 32], strides = [1, 1]} : vector<48x32xf32> to vector<6x32xf32>
    %60 = vector.extract_strided_slice %24 {offsets = [16, 0], sizes = [6, 32], strides = [1, 1]} : vector<48x32xf32> to vector<6x32xf32>
    %61 = vector.extract_strided_slice %24 {offsets = [17, 0], sizes = [6, 32], strides = [1, 1]} : vector<48x32xf32> to vector<6x32xf32>
    %62 = vector.extract_strided_slice %24 {offsets = [18, 0], sizes = [6, 32], strides = [1, 1]} : vector<48x32xf32> to vector<6x32xf32>
    %63 = tpu.concatenate %54, %55, %56, %57, %58, %59, %60, %61, %62 in 1 : vector<6x32xf32>, vector<6x32xf32>, vector<6x32xf32>, vector<6x32xf32>, vector<6x32xf32>, vector<6x32xf32>, vector<6x32xf32>, vector<6x32xf32>, vector<6x32xf32> -> vector<6x288xf32>
    %64 = vector.extract_strided_slice %24 {offsets = [24, 0], sizes = [6, 32], strides = [1, 1]} : vector<48x32xf32> to vector<6x32xf32>
    %65 = vector.extract_strided_slice %24 {offsets = [25, 0], sizes = [6, 32], strides = [1, 1]} : vector<48x32xf32> to vector<6x32xf32>
    %66 = vector.extract_strided_slice %24 {offsets = [26, 0], sizes = [6, 32], strides = [1, 1]} : vector<48x32xf32> to vector<6x32xf32>
    %67 = vector.extract_strided_slice %24 {offsets = [32, 0], sizes = [6, 32], strides = [1, 1]} : vector<48x32xf32> to vector<6x32xf32>
    %68 = vector.extract_strided_slice %24 {offsets = [33, 0], sizes = [6, 32], strides = [1, 1]} : vector<48x32xf32> to vector<6x32xf32>
    %69 = vector.extract_strided_slice %24 {offsets = [34, 0], sizes = [6, 32], strides = [1, 1]} : vector<48x32xf32> to vector<6x32xf32>
    %70 = vector.extract_strided_slice %24 {offsets = [40, 0], sizes = [6, 32], strides = [1, 1]} : vector<48x32xf32> to vector<6x32xf32>
    %71 = vector.extract_strided_slice %24 {offsets = [41, 0], sizes = [6, 32], strides = [1, 1]} : vector<48x32xf32> to vector<6x32xf32>
    %72 = vector.extract_strided_slice %24 {offsets = [42, 0], sizes = [6, 32], strides = [1, 1]} : vector<48x32xf32> to vector<6x32xf32>
    %73 = tpu.concatenate %64, %65, %66, %67, %68, %69, %70, %71, %72 in 1 : vector<6x32xf32>, vector<6x32xf32>, vector<6x32xf32>, vector<6x32xf32>, vector<6x32xf32>, vector<6x32xf32>, vector<6x32xf32>, vector<6x32xf32>, vector<6x32xf32> -> vector<6x288xf32>
    %74 = tpu.concatenate %63, %73 in 0 : vector<6x288xf32>, vector<6x288xf32> -> vector<12x288xf32>
    %c192 = arith.constant 192 : index
    %c0_15 = arith.constant 0 : index
    %75 = vector.load %arg2[%c192, %c0_15] : memref<480x4xf32, #tpu.memory_space<vmem>>, vector<288x4xf32>
    %c2_16 = arith.constant 2 : index
    %c4 = arith.constant 4 : index
    %76 = vector.load %arg3[%c2_16, %c4] : memref<12x32xf32, #tpu.memory_space<vmem>>, vector<1x4xf32>
    %cst_17 = arith.constant dense<0.000000e+00> : vector<12x4xf32>
    %77 = tpu.matmul %74, %75, %cst_17 {dimension_numbers = #tpu.dot_dimension_numbers<[1], [0], [0], [1], [0, 0, 1, 1], [], []>} : vector<12x288xf32>, vector<288x4xf32>, vector<12x4xf32> -> vector<12x4xf32>
    %78 = vector.broadcast %76 : vector<1x4xf32> to vector<12x4xf32>
    %79 = arith.addf %77, %78 : vector<12x4xf32>
    %cst_18 = arith.constant 0.000000e+00 : f32
    %80 = vector.broadcast %cst_18 : f32 to vector<12x4xf32>
    %81 = arith.maximumf %79, %80 : vector<12x4xf32>
    %82 = vector.extract_strided_slice %81 {offsets = [0, 0], sizes = [6, 4], strides = [1, 1]} : vector<12x4xf32> to vector<6x4xf32>
    %cst_19 = arith.constant dense<0xFF800000> : vector<4xf32>
    %83 = vector.multi_reduction <maximumf>, %82, %cst_19 [0] : vector<6x4xf32> to vector<4xf32>
    %84 = vector.shape_cast %83 : vector<4xf32> to vector<1x4xf32>
    %85 = vector.extract_strided_slice %81 {offsets = [6, 0], sizes = [6, 4], strides = [1, 1]} : vector<12x4xf32> to vector<6x4xf32>
    %cst_20 = arith.constant dense<0xFF800000> : vector<4xf32>
    %86 = vector.multi_reduction <maximumf>, %85, %cst_20 [0] : vector<6x4xf32> to vector<4xf32>
    %87 = vector.shape_cast %86 : vector<4xf32> to vector<1x4xf32>
    %88 = tpu.concatenate %84, %87 in 0 : vector<1x4xf32>, vector<1x4xf32> -> vector<2x4xf32>
    %89 = tpu.concatenate %53, %88 in 1 : vector<2x4xf32>, vector<2x4xf32> -> vector<2x8xf32>
    %c4_21 = arith.constant 4 : index
    %c0_22 = arith.constant 0 : index
    %90 = vector.load %arg3[%c4_21, %c0_22] : memref<12x32xf32, #tpu.memory_space<vmem>>, vector<8x3xf32>
    %c3 = arith.constant 3 : index
    %c0_23 = arith.constant 0 : index
    %91 = vector.load %arg3[%c3, %c0_23] : memref<12x32xf32, #tpu.memory_space<vmem>>, vector<1x3xf32>
    %cst_24 = arith.constant dense<0.000000e+00> : vector<2x3xf32>
    %92 = tpu.matmul %89, %90, %cst_24 {dimension_numbers = #tpu.dot_dimension_numbers<[1], [0], [0], [1], [0, 0, 1, 1], [], []>} : vector<2x8xf32>, vector<8x3xf32>, vector<2x3xf32> -> vector<2x3xf32>
    %93 = vector.broadcast %91 : vector<1x3xf32> to vector<2x3xf32>
    %94 = arith.addf %92, %93 : vector<2x3xf32>
    %c0_25 = arith.constant 0 : index
    %c0_26 = arith.constant 0 : index
    %95 = vector.load %arg4[%c0_25, %c0_26] : memref<2x3xf32, #tpu.memory_space<vmem>>, vector<2x3xf32>
    tpu.vector_store %arg4[%c0_25, %c0_26], %94 {strides = array<i32>} : memref<2x3xf32, #tpu.memory_space<vmem>>, vector<2x3xf32>,
    return
  }
  func.func @transform_0(%arg0: i32) -> (i32, i32) {
    %c0_i32 = arith.constant 0 : i32
    %c0_i32_0 = arith.constant 0 : i32
    %c0_i32_1 = arith.constant 0 : i32
    return %c0_i32, %c0_i32_0 : i32, i32
  }
  func.func @transform_1(%arg0: i32) -> (i32, i32) {
    %c0_i32 = arith.constant 0 : i32
    %c0_i32_0 = arith.constant 0 : i32
    %c0_i32_1 = arith.constant 0 : i32
    return %c0_i32, %c0_i32_0 : i32, i32
  }
  func.func @transform_2(%arg0: i32) -> (i32, i32) {
    %c0_i32 = arith.constant 0 : i32
    %c0_i32_0 = arith.constant 0 : i32
    %c0_i32_1 = arith.constant 0 : i32
    return %c0_i32, %c0_i32_0 : i32, i32
  }
  func.func @transform_3(%arg0: i32) -> (i32, i32) {
    %c0_i32 = arith.constant 0 : i32
    %c0_i32_0 = arith.constant 0 : i32
    %c0_i32_1 = arith.constant 0 : i32
    return %c0_i32, %c0_i32_0 : i32, i32
  }
}

</mosaic_0001>

<llo_original>
// kernel: tpu_custom_call.1
$region0: #{tpu_custom_call.1}
  #allocation0 [shape = 'u32[]', space=smem, size = 0x4, offset = 0x4, fixed_abs, tag = 'smem constant byte address 0x4 - core index']
  #allocation1 [shape = 'u32[144,128]{1,0:T(1,128)}', space=vmem, size = 0x12000, scoped, tag = 'internal scratch']
  %s0 = inlined_call_operand.vmem [shape: f32[48,32], index: 0, kind: input, shape index: {}]
  %s1 = inlined_call_operand.vmem [shape: f32[480,4], index: 1, kind: input, shape index: {}]
  %s2 = inlined_call_operand.vmem [shape: f32[12,32], index: 2, kind: input, shape index: {}]
  %s3 = inlined_call_operand.hbm [shape: f32[2,3], index: 3, kind: output, shape index: {}]
  %s4 = sld [smem:[#allocation0]]
  $region22: #{tpu_custom_call.1} parent=0
    _
  %s6 = ssub.s32 1, %s4
  %s7 = scalar_select 0, %s6, %s4
  $region1: #{tpu_custom_call.1} parent=0
    #allocation2 [shape = 'u8[1024]{0}', space=vmem, size = 0x400, scoped, tag = 'output window, operand 0, single buffered']
    #allocation3 [shape = 's32[1]{0}', space=sflag, size = 0x4, scoped, tag = 'scoped memory for tpu_custom_call.1']
    %8 = vsyncpa [#allocation3], 0
    // Predicated region
    $region2: #{tpu_custom_call.1} parent=1 // pred_check
      _
    $region3: #{tpu_custom_call.1} parent=1 // pred_check_branch
      %10 = sbr.rel (0) target = $region5
    $region4: #{tpu_custom_call.1} parent=1 // pred_region
      _
    $region5: #{tpu_custom_call.1} parent=1 // pred_fallthru
      _
    // Predicated region
    $region6: #{tpu_custom_call.1} parent=1 // pred_check
      _
    $region7: #{tpu_custom_call.1} parent=1 // pred_check_branch
      %12 = sbr.rel (0) target = $region9
    $region8: #{tpu_custom_call.1} parent=1 // pred_region
      _
    $region9: #{tpu_custom_call.1} parent=1 // pred_fallthru
      _
    // Predicated region
    $region10: #{tpu_custom_call.1} parent=1 // pred_check
      _
    $region11: #{tpu_custom_call.1} parent=1 // pred_check_branch
      %14 = sbr.rel (0) target = $region13
    $region12: #{tpu_custom_call.1} parent=1 // pred_region
      _
    $region13: #{tpu_custom_call.1} parent=1 // pred_fallthru
      _
    %v15 = vld [vmem:[%s0] sm:$0xff]
    %v16 = vld [vmem:[%s0 + $0x8] sm:$0xff]
    %v17 = vld [vmem:[%s0 + $0x10] sm:$0xff]
    %v18 = vld [vmem:[%s0 + $0x18] sm:$0xff]
    %v19 = vld [vmem:[%s0 + $0x20] sm:$0xff]
    %v20 = vld [vmem:[%s0 + $0x28] sm:$0xff]
    %v21 = vld [vmem:[%s2] sm:$0x1]
    %v22 = vld [vmem:[%s2 + $0x1] sm:$0x1]
    %vm23 = vcmask 261120
    %v24 = vsel %vm23, %v15, 0.0
    %25 = vadd.xlane.f32.xlu0 %v24
    %v26 = vpop.xlane.xlu0 %25
    %v27 = vsel %vm23, %v16, 0.0
    %28 = vadd.xlane.f32.xlu0 %v27
    %v29 = vpop.xlane.xlu0 %28
    %v30 = vsel %vm23, %v17, 0.0
    %31 = vadd.xlane.f32.xlu0 %v30
    %v32 = vpop.xlane.xlu0 %31
    %v33 = vsel %vm23, %v18, 0.0
    %34 = vadd.xlane.f32.xlu0 %v33
    %v35 = vpop.xlane.xlu0 %34
    %v36 = vsel %vm23, %v19, 0.0
    %37 = vadd.xlane.f32.xlu0 %v36
    %v38 = vpop.xlane.xlu0 %37
    %v39 = vsel %vm23, %v20, 0.0
    %40 = vadd.xlane.f32.xlu0 %v39
    %v41 = vpop.xlane.xlu0 %40
    %v42 = vrcp.pop 32.0
    %v43 = vmul.f32 %v26, %v42
    %v44 = vmul.f32 %v29, %v42
    %v45 = vmul.f32 %v32, %v42
    %v46 = vmul.f32 %v35, %v42
    %v47 = vmul.f32 %v38, %v42
    %v48 = vmul.f32 %v41, %v42
    %v49 = vsub.f32 %v15, %v43
    %v50 = vsub.f32 %v16, %v44
    %v51 = vsub.f32 %v17, %v45
    %v52 = vsub.f32 %v18, %v46
    %v53 = vsub.f32 %v19, %v47
    %v54 = vsub.f32 %v20, %v48
    %v55 = vmul.f32 %v49, %v49
    %v56 = vmul.f32 %v50, %v50
    %v57 = vmul.f32 %v51, %v51
    %v58 = vmul.f32 %v52, %v52
    %v59 = vmul.f32 %v53, %v53
    %v60 = vmul.f32 %v54, %v54
    %v61 = vsel %vm23, %v55, 0.0
    %62 = vadd.xlane.f32.xlu0 %v61
    %v63 = vpop.xlane.xlu0 %62
    %v64 = vsel %vm23, %v56, 0.0
    %65 = vadd.xlane.f32.xlu0 %v64
    %v66 = vpop.xlane.xlu0 %65
    %v67 = vsel %vm23, %v57, 0.0
    %68 = vadd.xlane.f32.xlu0 %v67
    %v69 = vpop.xlane.xlu0 %68
    %v70 = vsel %vm23, %v58, 0.0
    %71 = vadd.xlane.f32.xlu0 %v70
    %v72 = vpop.xlane.xlu0 %71
    %v73 = vsel %vm23, %v59, 0.0
    %74 = vadd.xlane.f32.xlu0 %v73
    %v75 = vpop.xlane.xlu0 %74
    %v76 = vsel %vm23, %v60, 0.0
    %77 = vadd.xlane.f32.xlu0 %v76
    %v78 = vpop.xlane.xlu0 %77
    %v79 = vmul.f32 %v63, %v42
    %v80 = vmul.f32 %v66, %v42
    %v81 = vmul.f32 %v69, %v42
    %v82 = vmul.f32 %v72, %v42
    %v83 = vmul.f32 %v75, %v42
    %v84 = vmul.f32 %v78, %v42
    %v85 = vadd.f32 %v79, 1e-12
    %v86 = vadd.f32 %v80, 1e-12
    %v87 = vadd.f32 %v81, 1e-12
    %v88 = vadd.f32 %v82, 1e-12
    %v89 = vadd.f32 %v83, 1e-12
    %v90 = vadd.f32 %v84, 1e-12
    %v91 = vrsqrt.pop %v85
    %v92 = vrsqrt.pop %v86
    %v93 = vrsqrt.pop %v87
    %v94 = vrsqrt.pop %v88
    %v95 = vrsqrt.pop %v89
    %v96 = vrsqrt.pop %v90
    %v97 = vmul.f32 %v49, %v91
    %v98 = vmul.f32 %v50, %v92
    %v99 = vmul.f32 %v51, %v93
    %v100 = vmul.f32 %v52, %v94
    %v101 = vmul.f32 %v53, %v95
    %v102 = vmul.f32 %v54, %v96
    %v103 = vlaneseq
    %v104 = vshrl.u32 %v103, 7
    %v105 = vsub.s32 0, %v104
    %v106 = vrot.slane %v21, %v105
    %v107 = vmul.f32 %v97, %v106
    %v108 = vmul.f32 %v98, %v106
    %v109 = vmul.f32 %v99, %v106
    %v110 = vmul.f32 %v100, %v106
    %v111 = vmul.f32 %v101, %v106
    %v112 = vmul.f32 %v102, %v106
    %v113 = vlaneseq
    %v114 = vshrl.u32 %v113, 7
    %v115 = vsub.s32 0, %v114
    %v116 = vrot.slane %v22, %v115
    %v117 = vadd.f32 %v107, %v116
    %v118 = vadd.f32 %v108, %v116
    %v119 = vadd.f32 %v109, %v116
    %v120 = vadd.f32 %v110, %v116
    %v121 = vadd.f32 %v111, %v116
    %v122 = vadd.f32 %v112, %v116
    %v124 = vrot.slane %v117, 1
    %125 = vrot.lane.b32.xlu0 %v124, 32
    %v126 = vpop.permute.xlu0 %125
    %129 = vrot.lane.b32.xlu0 %v118, 64
    %v130 = vpop.permute.xlu0 %129
    %v132 = vrot.slane %v118, 1
    %133 = vrot.lane.b32.xlu0 %v132, 96
    %v134 = vpop.permute.xlu0 %133
    %v137 = vrot.slane %v119, 1
    %138 = vrot.lane.b32.xlu0 %v137, 32
    %v139 = vpop.permute.xlu0 %138
    %v141 = vsel %vm23, %v117, %v126
    %vm142 = vcmask 523264
    %v143 = vsel %vm142, %v141, %v130
    %vm144 = vcmask 785408
    %v145 = vsel %vm144, %v143, %v134
    %v146 = vsel %vm23, %v119, %v139
    %v148 = vrot.slane %v120, 1
    %149 = vrot.lane.b32.xlu0 %v148, 32
    %v150 = vpop.permute.xlu0 %149
    %153 = vrot.lane.b32.xlu0 %v121, 64
    %v154 = vpop.permute.xlu0 %153
    %v156 = vrot.slane %v121, 1
    %157 = vrot.lane.b32.xlu0 %v156, 96
    %v158 = vpop.permute.xlu0 %157
    %v161 = vrot.slane %v122, 1
    %162 = vrot.lane.b32.xlu0 %v161, 32
    %v163 = vpop.permute.xlu0 %162
    %v165 = vsel %vm23, %v120, %v150
    %v166 = vsel %vm142, %v165, %v154
    %v167 = vsel %vm144, %v166, %v158
    %v168 = vsel %vm23, %v122, %v163
    %v171 = vrot.slane %v167, 1
    %v172 = vrot.slane %v168, 1
    %vm175 = vcmask 1046528
    %v176 = vsel %vm175, %v145, %v171
    %v177 = vsel %vm175, %v146, %v172
    %v178 = vld [vmem:[%s1] sm:$0xff]
    %v179 = vld [vmem:[%s1 + $0x8] sm:$0xff]
    %v180 = vld [vmem:[%s1 + $0x10] sm:$0xff]
    %v181 = vld [vmem:[%s1 + $0x18] sm:$0xff]
    %v182 = vld [vmem:[%s1 + $0x20] sm:$0xff]
    %v183 = vld [vmem:[%s1 + $0x28] sm:$0xff]
    %v184 = vld [vmem:[%s1 + $0x30] sm:$0xff]
    %v185 = vld [vmem:[%s1 + $0x38] sm:$0xff]
    %v186 = vld [vmem:[%s1 + $0x40] sm:$0xff]
    %v187 = vld [vmem:[%s1 + $0x48] sm:$0xff]
    %v188 = vld [vmem:[%s1 + $0x50] sm:$0xff]
    %v189 = vld [vmem:[%s1 + $0x58] sm:$0xff]
    %v190 = vld [vmem:[%s1 + $0x60] sm:$0xff]
    %v191 = vld [vmem:[%s1 + $0x68] sm:$0xff]
    %v192 = vld [vmem:[%s1 + $0x70] sm:$0xff]
    %v193 = vld [vmem:[%s1 + $0x78] sm:$0xff]
    %v194 = vld [vmem:[%s1 + $0x80] sm:$0xff]
    %v195 = vld [vmem:[%s1 + $0x88] sm:$0xff]
    %v196 = vld [vmem:[%s1 + $0x90] sm:$0xff]
    %v197 = vld [vmem:[%s1 + $0x98] sm:$0xff]
    %v198 = vld [vmem:[%s1 + $0xa0] sm:$0xff]
    %v199 = vld [vmem:[%s1 + $0xa8] sm:$0xff]
    %v200 = vld [vmem:[%s1 + $0xb0] sm:$0xff]
    %v201 = vld [vmem:[%s1 + $0xb8] sm:$0xff]
    %v202 = vld [vmem:[%s2 + $0x2] sm:$0x1]
    %v203 = vlaneseq
    %v204 = vshrl.u32 %v203, 7
    %v205 = vsub.s32 0, %v204
    %v206 = vrot.slane %v202, %v205
    %v208 = vsel %vm142, %v177, 0
    %v210 = vsel %vm142, %v172, 0
    %212 = vmatprep.subr.mxu0 0.0
    %213 = vmatpush1.msra.mxu0 %v178
    %214 = vmatprep.subr.mxu0 0.0
    %215 = vmatpush1.msra.mxu0 %v179
    %216 = vmatprep.subr.mxu0 0.0
    %217 = vmatpush1.msra.mxu0 %v180
    %218 = vmatprep.subr.mxu0 0.0
    %219 = vmatpush1.msra.mxu0 %v181
    %220 = vmatprep.subr.mxu0 0.0
    %221 = vmatpush1.msra.mxu0 %v182
    %222 = vmatprep.subr.mxu0 0.0
    %223 = vmatpush1.msra.mxu0 %v183
    %224 = vmatprep.subr.mxu0 0.0
    %225 = vmatpush1.msra.mxu0 %v184
    %226 = vmatprep.subr.mxu0 0.0
    %227 = vmatpush1.msra.mxu0 %v185
    %228 = vmatprep.subr.mxu0 0.0
    %229 = vmatpush1.msra.mxu0 %v186
    %230 = vmatprep.subr.mxu0 0.0
    %231 = vmatpush1.msra.mxu0 %v187
    %232 = vmatprep.subr.mxu0 0.0
    %233 = vmatpush1.msra.mxu0 %v188
    %234 = vmatprep.subr.mxu0 0.0
    %235 = vmatpush1.msra.mxu0 %v189
    %236 = vmatprep.subr.mxu0 0.0
    %237 = vmatpush1.msra.mxu0 %v190
    %238 = vmatprep.subr.mxu0 0.0
    %239 = vmatpush1.msra.mxu0 %v191
    %240 = vmatprep.subr.mxu0 0.0
    %241 = vmatpush1.msra.mxu0 %v192
    %242 = vmatprep.subr.mxu0 0.0
    %243 = vmatpush1.msra.mxu0 %v193
    %244 = vmatprep.subr.mxu0 0.0
    %245 = vmatpush1.msra.mxu0 %v194
    %246 = vmatprep.subr.mxu0 0.0
    %247 = vmatpush1.msra.mxu0 %v195
    %248 = vmatprep.subr.mxu0 0.0
    %249 = vmatpush1.msra.mxu0 %v196
    %250 = vmatprep.subr.mxu0 0.0
    %251 = vmatpush1.msra.mxu0 %v197
    %252 = vmatprep.subr.mxu0 0.0
    %253 = vmatpush1.msra.mxu0 %v198
    %254 = vmatprep.subr.mxu0 0.0
    %255 = vmatpush1.msra.mxu0 %v199
    %256 = vmatprep.subr.mxu0 0.0
    %257 = vmatpush1.msra.mxu0 %v200
    %258 = vmatprep.subr.mxu0 0.0
    %259 = vmatpush1.msra.mxu0 %v201
    %260 = vmatprep.subr.mxu0 0.0
    %261 = vmatpush1.msra.mxu0 0.0
    %262 = vmatprep.subr.mxu0 0.0
    %263 = vmatpush1.msra.mxu0 0.0
    %264 = vmatprep.subr.mxu0 0.0
    %265 = vmatpush1.msra.mxu0 0.0
    %266 = vmatprep.subr.mxu0 0.0
    %267 = vmatpush1.msra.mxu0 0.0
    %268 = vmatprep.subr.mxu0 0.0
    %269 = vmatpush1.msra.mxu0 0.0
    %270 = vmatprep.subr.mxu0 0.0
    %271 = vmatpush1.msra.mxu0 0.0
    %272 = vmatprep.subr.mxu0 0.0
    %273 = vmatpush1.msra.mxu0 0.0
    %274 = vmatprep.subr.mxu0 0.0
    %275 = vmatpush1.msra.mxu0 0.0
    %276 = vmatprep.mubr.f32.mxu0 %v208
    %277 = vmatmul.mubr.f32.gmra.mrb[0].mxu0 %v176
    %v278 = vpop.f32.mrb[0].mxu0
    %v279 = vadd.f32 %v206, %v278
    %v280 = vpop.f32.mrb[0].mxu0
    %281 = vmatprep.mubr.f32.mxu0 %v210
    %282 = vmatmul.mubr.f32.gmra.mrb[0].mxu0 %v171
    %v283 = vpop.f32.mrb[0].mxu0
    %v284 = vadd.f32 %v206, %v283
    %v285 = vpop.f32.mrb[0].mxu0
    %286 = vdwg.mxu0
    %v287 = vmax.f32 %v279, 0.0
    %v288 = vmax.f32 %v284, 0.0
    %vm289 = vcmask 30720
    %v290 = vsel %vm289, %v287, -inf
    %v291 = vrot.slane %v290, 4
    %v292 = vmax.f32 %v290, %v291
    %v293 = vrot.slane %v292, 2
    %v294 = vmax.f32 %v292, %v293
    %v295 = vrot.slane %v294, 1
    %v296 = vmax.f32 %v294, %v295
    %vm297 = vcmask 31751
    %v298 = vsel %vm297, %v287, -inf
    %vm299 = vcmask 29696
    %v300 = vsel %vm299, %v288, -inf
    %v301 = vmax.f32 %v298, %v300
    %v302 = vrot.slane %v301, 4
    %v303 = vmax.f32 %v301, %v302
    %v304 = vrot.slane %v303, 2
    %v305 = vmax.f32 %v303, %v304
    %v306 = vrot.slane %v305, 1
    %v307 = vmax.f32 %v305, %v306
    %vm308 = vcmask 1040384
    %v309 = vsel %vm308, %v296, %v307
    %v310 = vrot.slane %v117, 2
    %311 = vrot.lane.b32.xlu0 %v310, 64
    %v312 = vpop.permute.xlu0 %311
    %314 = vrot.lane.b32.xlu0 %v118, 96
    %v315 = vpop.permute.xlu0 %314
    %v318 = vrot.slane %v118, 2
    %319 = vrot.lane.b32.xlu0 %v318, 32
    %v320 = vpop.permute.xlu0 %319
    %322 = vrot.lane.b32.xlu0 %v119, 64
    %v323 = vpop.permute.xlu0 %322
    %325 = vrot.lane.b32.xlu0 %v137, 96
    %v326 = vpop.permute.xlu0 %325
    %v328 = vrot.slane %v119, 2
    %v330 = vsel %vm142, %v141, %v312
    %v331 = vsel %vm144, %v330, %v315
    %v332 = vsel %vm23, %v132, %v320
    %v333 = vsel %vm142, %v332, %v323
    %v334 = vsel %vm144, %v333, %v326
    %v335 = vrot.slane %v120, 2
    %336 = vrot.lane.b32.xlu0 %v335, 64
    %v337 = vpop.permute.xlu0 %336
    %339 = vrot.lane.b32.xlu0 %v121, 96
    %v340 = vpop.permute.xlu0 %339
    %v343 = vrot.slane %v121, 2
    %344 = vrot.lane.b32.xlu0 %v343, 32
    %v345 = vpop.permute.xlu0 %344
    %347 = vrot.lane.b32.xlu0 %v122, 64
    %v348 = vpop.permute.xlu0 %347
    %350 = vrot.lane.b32.xlu0 %v161, 96
    %v351 = vpop.permute.xlu0 %350
    %v353 = vrot.slane %v122, 2
    %v354 = vsel %vm142, %v165, %v337
    %v355 = vsel %vm144, %v354, %v340
    %v356 = vsel %vm23, %v156, %v345
    %v357 = vsel %vm142, %v356, %v348
    %v358 = vsel %vm144, %v357, %v351
    %v361 = vrot.slane %v355, 2
    %v362 = vrot.slane %v358, 2
    %v363 = vrot.slane %v353, 2
    %vm367 = vcmask 1045504
    %v368 = vsel %vm367, %v331, %v361
    %v369 = vsel %vm367, %v334, %v362
    %v370 = vsel %vm367, %v328, %v363
    %v371 = vld [vmem:[%s1 + $0xc0] sm:$0xff]
    %v372 = vld [vmem:[%s1 + $0xc8] sm:$0xff]
    %v373 = vld [vmem:[%s1 + $0xd0] sm:$0xff]
    %v374 = vld [vmem:[%s1 + $0xd8] sm:$0xff]
    %v375 = vld [vmem:[%s1 + $0xe0] sm:$0xff]
    %v376 = vld [vmem:[%s1 + $0xe8] sm:$0xff]
    %v377 = vld [vmem:[%s1 + $0xf0] sm:$0xff]
    %v378 = vld [vmem:[%s1 + $0xf8] sm:$0xff]
    %v379 = vld [vmem:[%s1 + $0x100] sm:$0xff]
    %v380 = vld [vmem:[%s1 + $0x108] sm:$0xff]
    %v381 = vld [vmem:[%s1 + $0x110] sm:$0xff]
    %v382 = vld [vmem:[%s1 + $0x118] sm:$0xff]
    %v383 = vld [vmem:[%s1 + $0x120] sm:$0xff]
    %v384 = vld [vmem:[%s1 + $0x128] sm:$0xff]
    %v385 = vld [vmem:[%s1 + $0x130] sm:$0xff]
    %v386 = vld [vmem:[%s1 + $0x138] sm:$0xff]
    %v387 = vld [vmem:[%s1 + $0x140] sm:$0xff]
    %v388 = vld [vmem:[%s1 + $0x148] sm:$0xff]
    %v389 = vld [vmem:[%s1 + $0x150] sm:$0xff]
    %v390 = vld [vmem:[%s1 + $0x158] sm:$0xff]
    %v391 = vld [vmem:[%s1 + $0x160] sm:$0xff]
    %v392 = vld [vmem:[%s1 + $0x168] sm:$0xff]
    %v393 = vld [vmem:[%s1 + $0x170] sm:$0xff]
    %v394 = vld [vmem:[%s1 + $0x178] sm:$0xff]
    %v395 = vld [vmem:[%s1 + $0x180] sm:$0xff]
    %v396 = vld [vmem:[%s1 + $0x188] sm:$0xff]
    %v397 = vld [vmem:[%s1 + $0x190] sm:$0xff]
    %v398 = vld [vmem:[%s1 + $0x198] sm:$0xff]
    %v399 = vld [vmem:[%s1 + $0x1a0] sm:$0xff]
    %v400 = vld [vmem:[%s1 + $0x1a8] sm:$0xff]
    %v401 = vld [vmem:[%s1 + $0x1b0] sm:$0xff]
    %v402 = vld [vmem:[%s1 + $0x1b8] sm:$0xff]
    %v403 = vld [vmem:[%s1 + $0x1c0] sm:$0xff]
    %v404 = vld [vmem:[%s1 + $0x1c8] sm:$0xff]
    %v405 = vld [vmem:[%s1 + $0x1d0] sm:$0xff]
    %v406 = vld [vmem:[%s1 + $0x1d8] sm:$0xff]
    %408 = vrot.lane.b32.xlu0 %v206, 124
    %v409 = vpop.permute.xlu0 %408
    %v412 = vsel %vm23, %v370, 0
    %v414 = vsel %vm23, %v363, 0
    %416 = vmatprep.subr.mxu0 0.0
    %417 = vmatpush1.msra.mxu0 %v371
    %418 = vmatprep.subr.mxu0 0.0
    %419 = vmatpush1.msra.mxu0 %v372
    %420 = vmatprep.subr.mxu0 0.0
    %421 = vmatpush1.msra.mxu0 %v373
    %422 = vmatprep.subr.mxu0 0.0
    %423 = vmatpush1.msra.mxu0 %v374
    %424 = vmatprep.subr.mxu0 0.0
    %425 = vmatpush1.msra.mxu0 %v375
    %426 = vmatprep.subr.mxu0 0.0
    %427 = vmatpush1.msra.mxu0 %v376
    %428 = vmatprep.subr.mxu0 0.0
    %429 = vmatpush1.msra.mxu0 %v377
    %430 = vmatprep.subr.mxu0 0.0
    %431 = vmatpush1.msra.mxu0 %v378
    %432 = vmatprep.subr.mxu0 0.0
    %433 = vmatpush1.msra.mxu0 %v379
    %434 = vmatprep.subr.mxu0 0.0
    %435 = vmatpush1.msra.mxu0 %v380
    %436 = vmatprep.subr.mxu0 0.0
    %437 = vmatpush1.msra.mxu0 %v381
    %438 = vmatprep.subr.mxu0 0.0
    %439 = vmatpush1.msra.mxu0 %v382
    %440 = vmatprep.subr.mxu0 0.0
    %441 = vmatpush1.msra.mxu0 %v383
    %442 = vmatprep.subr.mxu0 0.0
    %443 = vmatpush1.msra.mxu0 %v384
    %444 = vmatprep.subr.mxu0 0.0
    %445 = vmatpush1.msra.mxu0 %v385
    %446 = vmatprep.subr.mxu0 0.0
    %447 = vmatpush1.msra.mxu0 %v386
    %448 = vmatprep.subr.mxu0 0.0
    %449 = vmatpush1.msra.mxu0 %v387
    %450 = vmatprep.subr.mxu0 0.0
    %451 = vmatpush1.msra.mxu0 %v388
    %452 = vmatprep.subr.mxu0 0.0
    %453 = vmatpush1.msra.mxu0 %v389
    %454 = vmatprep.subr.mxu0 0.0
    %455 = vmatpush1.msra.mxu0 %v390
    %456 = vmatprep.subr.mxu0 0.0
    %457 = vmatpush1.msra.mxu0 %v391
    %458 = vmatprep.subr.mxu0 0.0
    %459 = vmatpush1.msra.mxu0 %v392
    %460 = vmatprep.subr.mxu0 0.0
    %461 = vmatpush1.msra.mxu0 %v393
    %462 = vmatprep.subr.mxu0 0.0
    %463 = vmatpush1.msra.mxu0 %v394
    %464 = vmatprep.subr.mxu0 0.0
    %465 = vmatpush1.msra.mxu0 %v395
    %466 = vmatprep.subr.mxu0 0.0
    %467 = vmatpush1.msra.mxu0 %v396
    %468 = vmatprep.subr.mxu0 0.0
    %469 = vmatpush1.msra.mxu0 %v397
    %470 = vmatprep.subr.mxu0 0.0
    %471 = vmatpush1.msra.mxu0 %v398
    %472 = vmatprep.subr.mxu0 0.0
    %473 = vmatpush1.msra.mxu0 %v399
    %474 = vmatprep.subr.mxu0 0.0
    %475 = vmatpush1.msra.mxu0 %v400
    %476 = vmatprep.subr.mxu0 0.0
    %477 = vmatpush1.msra.mxu0 %v401
    %478 = vmatprep.subr.mxu0 0.0
    %479 = vmatpush1.msra.mxu0 %v402
    %480 = vmatprep.mubr.f32.mxu0 %v369
    %481 = vmatmul.mubr.f32.gmra.mrb[0].mxu0 %v368
    %v482 = vpop.f32.mrb[0].mxu0
    %v483 = vadd.f32 %v409, %v482
    %v484 = vpop.f32.mrb[0].mxu0
    %485 = vmatprep.mubr.f32.mxu0 %v362
    %486 = vmatmul.mubr.f32.gmra.mrb[0].mxu0 %v361
    %v487 = vpop.f32.mrb[0].mxu0
    %v488 = vadd.f32 %v409, %v487
    %v489 = vpop.f32.mrb[0].mxu0
    %490 = vdwg.mxu0
    %491 = vmatprep.subr.mxu0 0.0
    %492 = vmatpush1.msra.mxu0 %v403
    %493 = vmatprep.subr.mxu0 0.0
    %494 = vmatpush1.msra.mxu0 %v404
    %495 = vmatprep.subr.mxu0 0.0
    %496 = vmatpush1.msra.mxu0 %v405
    %497 = vmatprep.subr.mxu0 0.0
    %498 = vmatpush1.msra.mxu0 %v406
    %499 = vmatprep.subr.mxu0 0.0
    %500 = vmatpush1.msra.mxu0 0.0
    %501 = vmatprep.subr.mxu0 0.0
    %502 = vmatpush1.msra.mxu0 0.0
    %503 = vmatprep.subr.mxu0 0.0
    %504 = vmatpush1.msra.mxu0 0.0
    %505 = vmatprep.subr.mxu0 0.0
    %506 = vmatpush1.msra.mxu0 0.0
    %507 = vmatprep.subr.mxu0 0.0
    %508 = vmatpush1.msra.mxu0 0.0
    %509 = vmatprep.subr.mxu0 0.0
    %510 = vmatpush1.msra.mxu0 0.0
    %511 = vmatprep.subr.mxu0 0.0
    %512 = vmatpush1.msra.mxu0 0.0
    %513 = vmatprep.subr.mxu0 0.0
    %514 = vmatpush1.msra.mxu0 0.0
    %515 = vmatprep.subr.mxu0 0.0
    %516 = vmatpush1.msra.mxu0 0.0
    %517 = vmatprep.subr.mxu0 0.0
    %518 = vmatpush1.msra.mxu0 0.0
    %519 = vmatprep.subr.mxu0 0.0
    %520 = vmatpush1.msra.mxu0 0.0
    %521 = vmatprep.subr.mxu0 0.0
    %522 = vmatpush1.msra.mxu0 0.0
    %523 = vmatprep.subr.mxu0 0.0
    %524 = vmatpush1.msra.mxu0 0.0
    %525 = vmatprep.subr.mxu0 0.0
    %526 = vmatpush1.msra.mxu0 0.0
    %527 = vmatprep.subr.mxu0 0.0
    %528 = vmatpush1.msra.mxu0 0.0
    %529 = vmatprep.subr.mxu0 0.0
    %530 = vmatpush1.msra.mxu0 0.0
    %531 = vmatprep.subr.mxu0 0.0
    %532 = vmatpush1.msra.mxu0 0.0
    %533 = vmatprep.subr.mxu0 0.0
    %534 = vmatpush1.msra.mxu0 0.0
    %535 = vmatprep.subr.mxu0 0.0
    %536 = vmatpush1.msra.mxu0 0.0
    %537 = vmatprep.subr.mxu0 0.0
    %538 = vmatpush1.msra.mxu0 0.0
    %539 = vmatprep.subr.mxu0 0.0
    %540 = vmatpush1.msra.mxu0 0.0
    %541 = vmatprep.subr.mxu0 0.0
    %542 = vmatpush1.msra.mxu0 0.0
    %543 = vmatprep.subr.mxu0 0.0
    %544 = vmatpush1.msra.mxu0 0.0
    %545 = vmatprep.subr.mxu0 0.0
    %546 = vmatpush1.msra.mxu0 0.0
    %547 = vmatprep.subr.mxu0 0.0
    %548 = vmatpush1.msra.mxu0 0.0
    %549 = vmatprep.subr.mxu0 0.0
    %550 = vmatpush1.msra.mxu0 0.0
    %551 = vmatprep.subr.mxu0 0.0
    %552 = vmatpush1.msra.mxu0 0.0
    %553 = vmatprep.subr.mxu0 0.0
    %554 = vmatpush1.msra.mxu0 0.0
    %555 = vmatprep.mubr.f32.mxu0 0.0
    %556 = vmatmul.mubr.f32.gmra.mrb[0].mxu0 %v412
    %v557 = vpop.f32.mrb[0].mxu0
    %v558 = vadd.f32 %v483, %v557
    %v559 = vpop.f32.mrb[0].mxu0
    %560 = vmatprep.mubr.f32.mxu0 0.0
    %561 = vmatmul.mubr.f32.gmra.mrb[0].mxu0 %v414
    %v562 = vpop.f32.mrb[0].mxu0
    %v563 = vadd.f32 %v488, %v562
    %v564 = vpop.f32.mrb[0].mxu0
    %565 = vdwg.mxu0
    %v566 = vmax.f32 %v558, 0.0
    %v567 = vmax.f32 %v563, 0.0
    %v568 = vsel %vm299, %v566, -inf
    %v569 = vrot.slane %v568, 4
    %v570 = vmax.f32 %v568, %v569
    %v571 = vrot.slane %v570, 2
    %v572 = vmax.f32 %v570, %v571
    %v573 = vrot.slane %v572, 1
    %v574 = vmax.f32 %v572, %v573
    %vm575 = vcmask 31750
    %v576 = vsel %vm575, %v566, -inf
    %vm577 = vcmask 27648
    %v578 = vsel %vm577, %v567, -inf
    %v579 = vmax.f32 %v576, %v578
    %v580 = vrot.slane %v579, 4
    %v581 = vmax.f32 %v579, %v580
    %v582 = vrot.slane %v581, 2
    %v583 = vmax.f32 %v581, %v582
    %v584 = vrot.slane %v583, 1
    %v585 = vmax.f32 %v583, %v584
    %v586 = vsel %vm308, %v574, %v585
    %588 = vrot.lane.b32.xlu0 %v586, 4
    %v589 = vpop.permute.xlu0 %588
    %vm591 = vcmask 31744
    %v592 = vsel %vm591, %v309, %v589
    %v593 = vld [vmem:[%s2 + $0x4] sm:$0xff]
    %v594 = vld [vmem:[%s2 + $0x3] sm:$0x1]
    %v595 = vlaneseq
    %v596 = vshrl.u32 %v595, 7
    %v597 = vsub.s32 0, %v596
    %v598 = vrot.slane %v594, %v597
    %vm599 = vcmask 64512
    %v601 = vsel %vm599, %v592, 0
    %603 = vmatprep.subr.mxu0 0.0
    %604 = vmatpush1.msra.mxu0 %v593
    %605 = vmatprep.subr.mxu0 0.0
    %606 = vmatpush1.msra.mxu0 0.0
    %607 = vmatprep.subr.mxu0 0.0
    %608 = vmatpush1.msra.mxu0 0.0
    %609 = vmatprep.subr.mxu0 0.0
    %610 = vmatpush1.msra.mxu0 0.0
    %611 = vmatprep.subr.mxu0 0.0
    %612 = vmatpush1.msra.mxu0 0.0
    %613 = vmatprep.subr.mxu0 0.0
    %614 = vmatpush1.msra.mxu0 0.0
    %615 = vmatprep.subr.mxu0 0.0
    %616 = vmatpush1.msra.mxu0 0.0
    %617 = vmatprep.subr.mxu0 0.0
    %618 = vmatpush1.msra.mxu0 0.0
    %619 = vmatprep.subr.mxu0 0.0
    %620 = vmatpush1.msra.mxu0 0.0
    %621 = vmatprep.subr.mxu0 0.0
    %622 = vmatpush1.msra.mxu0 0.0
    %623 = vmatprep.subr.mxu0 0.0
    %624 = vmatpush1.msra.mxu0 0.0
    %625 = vmatprep.subr.mxu0 0.0
    %626 = vmatpush1.msra.mxu0 0.0
    %627 = vmatprep.subr.mxu0 0.0
    %628 = vmatpush1.msra.mxu0 0.0
    %629 = vmatprep.subr.mxu0 0.0
    %630 = vmatpush1.msra.mxu0 0.0
    %631 = vmatprep.subr.mxu0 0.0
    %632 = vmatpush1.msra.mxu0 0.0
    %633 = vmatprep.subr.mxu0 0.0
    %634 = vmatpush1.msra.mxu0 0.0
    %635 = vmatprep.subr.mxu0 0.0
    %636 = vmatpush1.msra.mxu0 0.0
    %637 = vmatprep.subr.mxu0 0.0
    %638 = vmatpush1.msra.mxu0 0.0
    %639 = vmatprep.subr.mxu0 0.0
    %640 = vmatpush1.msra.mxu0 0.0
    %641 = vmatprep.subr.mxu0 0.0
    %642 = vmatpush1.msra.mxu0 0.0
    %643 = vmatprep.subr.mxu0 0.0
    %644 = vmatpush1.msra.mxu0 0.0
    %645 = vmatprep.subr.mxu0 0.0
    %646 = vmatpush1.msra.mxu0 0.0
    %647 = vmatprep.subr.mxu0 0.0
    %648 = vmatpush1.msra.mxu0 0.0
    %649 = vmatprep.subr.mxu0 0.0
    %650 = vmatpush1.msra.mxu0 0.0
    %651 = vmatprep.subr.mxu0 0.0
    %652 = vmatpush1.msra.mxu0 0.0
    %653 = vmatprep.subr.mxu0 0.0
    %654 = vmatpush1.msra.mxu0 0.0
    %655 = vmatprep.subr.mxu0 0.0
    %656 = vmatpush1.msra.mxu0 0.0
    %657 = vmatprep.subr.mxu0 0.0
    %658 = vmatpush1.msra.mxu0 0.0
    %659 = vmatprep.subr.mxu0 0.0
    %660 = vmatpush1.msra.mxu0 0.0
    %661 = vmatprep.subr.mxu0 0.0
    %662 = vmatpush1.msra.mxu0 0.0
    %663 = vmatprep.subr.mxu0 0.0
    %664 = vmatpush1.msra.mxu0 0.0
    %665 = vmatprep.subr.mxu0 0.0
    %666 = vmatpush1.msra.mxu0 0.0
    %667 = vmatprep.mubr.f32.mxu0 0.0
    %668 = vmatmul.mubr.f32.gmra.mrb[0].mxu0 %v601
    %v669 = vpop.f32.mrb[0].mxu0
    %v670 = vadd.f32 %v598, %v669
    %v671 = vpop.f32.mrb[0].mxu0
    %672 = vdwg.mxu0
    %vm673 = vcmask 17408
    %674 = vst.msk [vmem:[#allocation2] sm:$0x3] %vm673, %v670
    // Predicated region
    $region14: #{tpu_custom_call.1} parent=1 // pred_check
      _
    $region15: #{tpu_custom_call.1} parent=1 // pred_check_branch
      %676 = sbr.rel (0) target = $region17
    $region16: #{tpu_custom_call.1} parent=1 // pred_region
      %s678 = ssub.s32 32, 32
      %679 = vsyncadd [#allocation3], %s678
      %s681 = sshll.u32 [#allocation2], 4
      %s682 = int_to_ptr.vmem [resolvable:$true] %s681
      %684 = dma.vmem_to_hbm [thread:$0]  %s682, 32, %s3, [#allocation3]
    $region17: #{tpu_custom_call.1} parent=1 // pred_fallthru
      _
    // Predicated region
    $region18: #{tpu_custom_call.1} parent=1 // pred_check
      _
    $region19: #{tpu_custom_call.1} parent=1 // pred_check_branch
      %686 = sbr.rel (0) target = $region21
    $region20: #{tpu_custom_call.1} parent=1 // pred_region
      %687 = dma.done [#allocation3], 32
    $region21: #{tpu_custom_call.1} parent=1 // pred_fallthru
      _
    %688 = vsyncpa [#allocation3], 1

</llo_original>
